<compile_context>
chip_gen: v5e
topology: v5e:2x2
jax: 0.10.0
libtpu: 0.0.40
codegen_flags: <defaults>
</compile_context>

<pallas_src>
import functools

import jax
import jax.numpy as jnp
from jax import lax
from jax.experimental import pallas as pl
from jax.experimental.pallas import tpu as pltpu

LANES = 128


def _bce_sum_kernel(pred_ref, mask_ref, out_ref, acc_ref, *,
                    rows_valid, row_tile, tiles_per_core, hard_targets,
                    maybe_ragged):
    i = pl.program_id(1)

    # Zero this core's vector accumulator at the start of its row range.
    @pl.when(i == 0)
    def _():
        acc_ref[...] = jnp.zeros_like(acc_ref)

    # Cast logits to f32 only once the tile is resident in VMEM.
    x = pred_ref[...].astype(jnp.float32)
    if hard_targets:
        # Compare in the native mask dtype; no intermediate f32 copy.
        y = (mask_ref[...] > 0).astype(jnp.float32)
    else:
        y = mask_ref[...].astype(jnp.float32)

    # Numerically stable BCE-with-logits:
    #   loss = max(x, 0) - x*y + log(1 + exp(-|x|))
    loss = jnp.maximum(x, 0.0) - x * y + jnp.log1p(jnp.exp(-jnp.abs(x)))

    def _accum(l):
        # Fold sublanes down to a vreg-shaped (8, 128) partial: pure VPU adds.
        acc_ref[...] += l.reshape(row_tile // 8, 8, LANES).sum(axis=0)

    if maybe_ragged:
        # Global (core-major) block index; only the trailing block(s) of the
        # array can be ragged / out of range, so mask only there.
        b = pl.program_id(0) * tiles_per_core + i
        is_ragged = (b + 1) * row_tile > rows_valid

        @pl.when(is_ragged)
        def _():
            row_ids = b * row_tile + lax.broadcasted_iota(
                jnp.int32, (row_tile, LANES), 0)
            # Single select on the loss; dead rows (garbage/NaN) are dropped.
            _accum(jnp.where(row_ids < rows_valid, loss, 0.0))

        @pl.when(jnp.logical_not(is_ragged))
        def _():
            _accum(loss)
    else:
        _accum(loss)

    # One cross-lane reduce per core, on its last grid step.
    @pl.when(i == pl.num_programs(1) - 1)
    def _():
        out_ref[0, 0] = jnp.sum(acc_ref[...])


def multi_label_loss(pred, mask, hard_targets=True, row_tile=4096):
    """Mean BCE-with-logits over all elements (MultiLabelLoss.forward)."""
    assert pred.shape == mask.shape
    n_elems = pred.size

    pred_flat = pred.reshape(-1)
    mask_flat = mask.reshape(-1)

    rows = n_elems // LANES
    tail = n_elems - rows * LANES

    total = jnp.float32(0.0)

    if rows > 0:
        # Tile must be a multiple of 8 sublanes; shrink for small inputs.
        row_tile = max(8, (row_tile // 8) * 8)
        rt = min(row_tile, ((rows + 7) // 8) * 8)
        n_main = rows * LANES

        pred2d = pred_flat[:n_main].reshape(rows, LANES)
        mask2d = mask_flat[:n_main].reshape(rows, LANES)

        num_blocks = pl.cdiv(rows, rt)
        # v7x: shard the outer axis over its 2 TensorCores; 1-TC chips just
        # iterate it serially (no harm).  Only split if there is >1 block.
        num_cores = 2 if num_blocks >= 2 else 1
        tpc = pl.cdiv(num_blocks, num_cores)
        # Any block ragged, or grid padded past the last real block?
        maybe_ragged = (num_cores * tpc * rt) != rows

        def in_map(c, i):
            # Clamp so grid steps past the last real block re-read it (their
            # contribution is fully masked away in-kernel).
            return (jnp.minimum(c * tpc + i, num_blocks - 1), 0)

        kernel = functools.partial(
            _bce_sum_kernel,
            rows_valid=rows,
            row_tile=rt,
            tiles_per_core=tpc,
            hard_targets=hard_targets,
            maybe_ragged=maybe_ragged,
        )

        bytes_in = n_main * (pred2d.dtype.itemsize + mask2d.dtype.itemsize)
        cost = pl.CostEstimate(
            flops=6 * n_main,
            transcendentals=2 * n_main,
            bytes_accessed=bytes_in + 4 * num_cores,
        )

        partials = pl.pallas_call(
            kernel,
            out_shape=jax.ShapeDtypeStruct((num_cores, 1), jnp.float32),
            grid_spec=pltpu.PrefetchScalarGridSpec(
                num_scalar_prefetch=0,
                grid=(num_cores, tpc),
                in_specs=[
                    pl.BlockSpec((rt, LANES), in_map),
                    pl.BlockSpec((rt, LANES), in_map),
                ],
                out_specs=pl.BlockSpec(
                    (1, 1), lambda c, i: (c, 0), memory_space=pltpu.SMEM
                ),
                scratch_shapes=[pltpu.VMEM((8, LANES), jnp.float32)],
            ),
            compiler_params=pltpu.CompilerParams(
                dimension_semantics=("parallel", "arbitrary")
            ),
            cost_estimate=cost,
        )(pred2d, mask2d)
        total = total + jnp.sum(partials)

    if tail > 0:
        # Tiny remainder (< 128 elems): plain jnp, avoids padding big arrays.
        tx = pred_flat[rows * LANES:].astype(jnp.float32)
        tm = mask_flat[rows * LANES:]
        ty = (tm > 0).astype(jnp.float32) if hard_targets else tm.astype(jnp.float32)
        tloss = jnp.maximum(tx, 0.0) - tx * ty + jnp.log1p(jnp.exp(-jnp.abs(tx)))
        total = total + jnp.sum(tloss)

    return total / jnp.float32(n_elems)


def _reference(pred, mask, hard_targets=True):
    x = pred.astype(jnp.float32)
    y = (mask > 0).astype(jnp.float32) if hard_targets else mask.astype(jnp.float32)
    loss = jnp.maximum(x, 0.0) - x * y + jnp.log1p(jnp.exp(-jnp.abs(x)))
    return jnp.mean(loss)


if __name__ == "__main__":
    key = jax.random.PRNGKey(0)
    k1, k2, k3, k4 = jax.random.split(key, 4)

    # Main test: pred logits, mask multi-label map (values in {-1,0,1,2}).
    shape = (2, 4, 16, 16)
    pred = jax.random.normal(k1, shape, dtype=jnp.float32)
    mask = jax.random.randint(k2, shape, minval=-1, maxval=3).astype(jnp.float32)

    loss = multi_label_loss(pred, mask, hard_targets=True)
    loss = jax.block_until_ready(loss)
    ref = _reference(pred, mask, hard_targets=True)
    assert jnp.allclose(loss, ref, rtol=1e-5, atol=1e-5), (loss, ref)

    # Second check: exercises the 2-core outer grid axis, ragged/clamped last
    # block, sub-128 tail, and soft (hard_targets=False) targets.
    n2 = 40 * LANES + 37
    pred2 = jax.random.normal(k3, (n2,), dtype=jnp.float32)
    mask2 = jax.random.uniform(k4, (n2,), dtype=jnp.float32)
    loss2 = multi_label_loss(pred2, mask2, hard_targets=False, row_tile=8)
    loss2 = jax.block_until_ready(loss2)
    ref2 = _reference(pred2, mask2, hard_targets=False)
    assert jnp.allclose(loss2, ref2, rtol=1e-5, atol=1e-5), (loss2, ref2)

    print("KERNEL_OK")
</pallas_src>

<mosaic_0001>
module attributes {stable_mosaic.version = 11 : i64} {
  func.func @_bce_sum_kernel(%arg0: i32, %arg1: i32, %arg2: memref<16x128xf32, #tpu.memory_space<vmem>>, %arg3: memref<16x128xf32, #tpu.memory_space<vmem>>, %arg4: memref<1x1xf32, #tpu.memory_space<smem>>, %arg5: memref<8x128xf32, #tpu.memory_space<vmem>>) attributes {dimension_semantics = [#tpu.dimension_semantics<parallel>, #tpu.dimension_semantics<arbitrary>], iteration_bounds = array<i64: 1, 1>, scalar_prefetch = 0 : i64, scratch_operands = 1 : i64, tpu.core_type = #tpu.core_type<tc>, window_params = [{transform_indices = @transform_0, window_bounds = array<i64: 16, 128>}, {transform_indices = @transform_1, window_bounds = array<i64: 16, 128>}, {transform_indices = @transform_2, window_bounds = array<i64: 1, 1>}]} {
    %c0_i32 = arith.constant 0 : i32
    %0 = arith.cmpi eq, %arg1, %c0_i32 : i32
    %1 = arith.extui %0 : i1 to i32
    %c0_i32_0 = arith.constant 0 : i32
    %2 = arith.cmpi ne, %1, %c0_i32_0 : i32
    scf.if %2 {
      %cst_13 = arith.constant 0.000000e+00 : f32
      %27 = vector.broadcast %cst_13 : f32 to vector<8x128xf32>
      %c0_14 = arith.constant 0 : index
      %c0_15 = arith.constant 0 : index
      %28 = vector.load %arg5[%c0_14, %c0_15] : memref<8x128xf32, #tpu.memory_space<vmem>>, vector<8x128xf32>
      tpu.vector_store %arg5[%c0_14, %c0_15], %27 {strides = array<i32>} : memref<8x128xf32, #tpu.memory_space<vmem>>, vector<8x128xf32>,
    } else {
    }
    %c0 = arith.constant 0 : index
    %c0_1 = arith.constant 0 : index
    %3 = vector.load %arg2[%c0, %c0_1] : memref<16x128xf32, #tpu.memory_space<vmem>>, vector<16x128xf32>
    %c0_2 = arith.constant 0 : index
    %c0_3 = arith.constant 0 : index
    %4 = vector.load %arg3[%c0_2, %c0_3] : memref<16x128xf32, #tpu.memory_space<vmem>>, vector<16x128xf32>
    %cst = arith.constant 0.000000e+00 : f32
    %5 = vector.broadcast %cst : f32 to vector<16x128xf32>
    %6 = arith.cmpf ogt, %4, %5 : vector<16x128xf32>
    %7 = arith.extui %6 : vector<16x128xi1> to vector<16x128xi32>
    %8 = arith.sitofp %7 : vector<16x128xi32> to vector<16x128xf32>
    %cst_4 = arith.constant 0.000000e+00 : f32
    %9 = vector.broadcast %cst_4 : f32 to vector<16x128xf32>
    %10 = arith.maximumf %3, %9 : vector<16x128xf32>
    %11 = arith.mulf %3, %8 : vector<16x128xf32>
    %12 = arith.subf %10, %11 : vector<16x128xf32>
    %13 = math.absf %3 : vector<16x128xf32>
    %cst_5 = arith.constant 0.000000e+00 : f32
    %14 = vector.broadcast %cst_5 : f32 to vector<16x128xf32>
    %15 = arith.subf %14, %13 : vector<16x128xf32>
    %16 = math.exp %15 : vector<16x128xf32>
    %17 = math.log1p %16 : vector<16x128xf32>
    %18 = arith.addf %12, %17 : vector<16x128xf32>
    %c0_6 = arith.constant 0 : index
    %c0_7 = arith.constant 0 : index
    %19 = vector.load %arg5[%c0_6, %c0_7] : memref<8x128xf32, #tpu.memory_space<vmem>>, vector<8x128xf32>
    %20 = vector.shape_cast %18 : vector<16x128xf32> to vector<2x8x128xf32>
    %cst_8 = arith.constant dense<0.000000e+00> : vector<8x128xf32>
    %21 = vector.multi_reduction <add>, %20, %cst_8 [0] : vector<2x8x128xf32> to vector<8x128xf32>
    %22 = arith.addf %19, %21 : vector<8x128xf32>
    %c0_9 = arith.constant 0 : index
    %c0_10 = arith.constant 0 : index
    %23 = vector.load %arg5[%c0_9, %c0_10] : memref<8x128xf32, #tpu.memory_space<vmem>>, vector<8x128xf32>
    tpu.vector_store %arg5[%c0_9, %c0_10], %22 {strides = array<i32>} : memref<8x128xf32, #tpu.memory_space<vmem>>, vector<8x128xf32>,
    %c0_i32_11 = arith.constant 0 : i32
    %24 = arith.cmpi eq, %arg1, %c0_i32_11 : i32
    %25 = arith.extui %24 : i1 to i32
    %c0_i32_12 = arith.constant 0 : i32
    %26 = arith.cmpi ne, %25, %c0_i32_12 : i32
    scf.if %26 {
      %c0_13 = arith.constant 0 : index
      %c0_14 = arith.constant 0 : index
      %27 = vector.load %arg5[%c0_13, %c0_14] : memref<8x128xf32, #tpu.memory_space<vmem>>, vector<8x128xf32>
      %28 = vector.shape_cast %27 : vector<8x128xf32> to vector<1x8x128xf32>
      %cst_15 = arith.constant dense<0.000000e+00> : vector<1xf32>
      %29 = vector.multi_reduction <add>, %28, %cst_15 [1, 2] : vector<1x8x128xf32> to vector<1xf32>
      %30 = vector.shape_cast %29 : vector<1xf32> to vector<1x1x1xf32>
      %31 = vector.extract %30[0, 0, 0] : f32 from vector<1x1x1xf32>
      %c0_16 = arith.constant 0 : index
      %c0_17 = arith.constant 0 : index
      %32 = memref.load %arg4[%c0_16, %c0_17] : memref<1x1xf32, #tpu.memory_space<smem>>
      memref.store %31, %arg4[%c0_16, %c0_17] : memref<1x1xf32, #tpu.memory_space<smem>>
    } else {
    }
    return
  }
  func.func @transform_0(%arg0: i32, %arg1: i32) -> (i32, i32) {
    %c1_i32 = arith.constant 1 : i32
    %0 = arith.muli %arg0, %c1_i32 : i32
    %1 = arith.addi %0, %arg1 : i32
    %c0_i32 = arith.constant 0 : i32
    %2 = arith.minsi %1, %c0_i32 : i32
    %c0_i32_0 = arith.constant 0 : i32
    %c0_i32_1 = arith.constant 0 : i32
    return %2, %c0_i32_0 : i32, i32
  }
  func.func @transform_1(%arg0: i32, %arg1: i32) -> (i32, i32) {
    %c1_i32 = arith.constant 1 : i32
    %0 = arith.muli %arg0, %c1_i32 : i32
    %1 = arith.addi %0, %arg1 : i32
    %c0_i32 = arith.constant 0 : i32
    %2 = arith.minsi %1, %c0_i32 : i32
    %c0_i32_0 = arith.constant 0 : i32
    %c0_i32_1 = arith.constant 0 : i32
    return %2, %c0_i32_0 : i32, i32
  }
  func.func @transform_2(%arg0: i32, %arg1: i32) -> (i32, i32) {
    %c0_i32 = arith.constant 0 : i32
    %c0_i32_0 = arith.constant 0 : i32
    return %arg0, %c0_i32 : i32, i32
  }
}

</mosaic_0001>

<llo_original>
// kernel: tpu_custom_call.1
$region0: #{tpu_custom_call.1}
  #allocation0 [shape = 'u32[]', space=smem, size = 0x4, offset = 0x4, fixed_abs, tag = 'smem constant byte address 0x4 - core index']
  #allocation1 [shape = 'u32[72,128]{1,0:T(1,128)}', space=vmem, size = 0x9000, scoped, tag = 'internal scratch']
  #allocation2 [shape = 'f32[8,128]{1,0:T(8,128)}', space=vmem, size = 0x1000, scoped, tag = 'scratch operand']
  %s0 = inlined_call_operand.hbm [shape: f32[16,128], index: 0, kind: input, shape index: {}]
  %s1 = inlined_call_operand.hbm [shape: f32[16,128], index: 1, kind: input, shape index: {}]
  %s2 = inlined_call_operand.hbm [shape: f32[1,1], index: 2, kind: output, shape index: {}]
  %s3 = sld [smem:[#allocation0]]
  $region34: #{tpu_custom_call.1} parent=0
    _
  %s5 = ssub.s32 1, %s3
  %s6 = scalar_select 0, %s5, %s3
  $region1: #{tpu_custom_call.1} parent=0
    #allocation3 [shape = 'u8[8192]{0}', space=vmem, size = 0x2000, scoped, tag = 'input window, operand 0, single buffered']
    #allocation4 [shape = 's32[1]{0}', space=sflag, size = 0x4, scoped, tag = 'scoped memory for tpu_custom_call.1']
    #allocation5 [shape = 's32[1]{0}', space=sflag, size = 0x4, scoped, tag = 'scoped memory for tpu_custom_call.1']
    #allocation6 [shape = 'u8[8192]{0}', space=vmem, size = 0x2000, scoped, tag = 'input window, operand 1, single buffered']
    #allocation7 [shape = 's32[1]{0}', space=sflag, size = 0x4, scoped, tag = 'scoped memory for tpu_custom_call.1']
    #allocation8 [shape = 'u8[512]{0}', space=smem, size = 0x200, scoped, tag = 'output window, operand 0, single buffered']
    %7 = vsyncpa [#allocation4], 0
    %8 = vsyncpa [#allocation7], 0
    %9 = vsyncpa [#allocation5], 0
    // Predicated region
    $region2: #{tpu_custom_call.1} parent=1 // pred_check
      _
    $region3: #{tpu_custom_call.1} parent=1 // pred_check_branch
      %11 = sbr.rel (0) target = $region5
    $region4: #{tpu_custom_call.1} parent=1 // pred_region
      %s12 = sadd.s32 0, 0
      %p13 = scmp.lt.s32.totalorder %s12, 0
      %s14 = scalar_select %p13, %s12, 0
      %s15 = smul.u32 2, %s14
      %17 = vsyncadd [#allocation4], 0
      %s18 = smul.addr %s15, 8
      %s19 = scalar_lea.hbm %s0, %s18
      %s20 = sshll.u32 %s19, 4
      %s21 = int_to_ptr.hbm [resolvable:$true] %s20
      %s22 = sshll.u32 [#allocation3], 4
      %s23 = int_to_ptr.vmem [resolvable:$true] %s22
      %28 = dma.hbm_to_vmem [thread:$0]  %s21, 256, %s23, [#allocation4], 128, 128, 8
    $region5: #{tpu_custom_call.1} parent=1 // pred_fallthru
      _
    // Predicated region
    $region6: #{tpu_custom_call.1} parent=1 // pred_check
      _
    $region7: #{tpu_custom_call.1} parent=1 // pred_check_branch
      %30 = sbr.rel (0) target = $region9
    $region8: #{tpu_custom_call.1} parent=1 // pred_region
      %s31 = sadd.s32 0, 0
      %p32 = scmp.lt.s32.totalorder %s31, 0
      %s33 = scalar_select %p32, %s31, 0
      %s34 = smul.u32 2, %s33
      %36 = vsyncadd [#allocation7], 0
      %s37 = smul.addr %s34, 8
      %s38 = scalar_lea.hbm %s1, %s37
      %s39 = sshll.u32 %s38, 4
      %s40 = int_to_ptr.hbm [resolvable:$true] %s39
      %s41 = sshll.u32 [#allocation6], 4
      %s42 = int_to_ptr.vmem [resolvable:$true] %s41
      %47 = dma.hbm_to_vmem [thread:$0]  %s40, 256, %s42, [#allocation7], 128, 128, 8
    $region9: #{tpu_custom_call.1} parent=1 // pred_fallthru
      _
    // Predicated region
    $region10: #{tpu_custom_call.1} parent=1 // pred_check
      _
    $region11: #{tpu_custom_call.1} parent=1 // pred_check_branch
      %49 = sbr.rel (0) target = $region13
    $region12: #{tpu_custom_call.1} parent=1 // pred_region
      %51 = dma.done [#allocation4], 256
    $region13: #{tpu_custom_call.1} parent=1 // pred_fallthru
      _
    // Predicated region
    $region14: #{tpu_custom_call.1} parent=1 // pred_check
      _
    $region15: #{tpu_custom_call.1} parent=1 // pred_check_branch
      %53 = sbr.rel (0) target = $region17
    $region16: #{tpu_custom_call.1} parent=1 // pred_region
      %55 = dma.done [#allocation7], 256
    $region17: #{tpu_custom_call.1} parent=1 // pred_fallthru
      _
    %s56 = sadd.s32 0, 0
    %p57 = scmp.lt.s32.totalorder %s56, 0
    %s58 = scalar_select %p57, %s56, 0
    %s59 = smul.u32 2, %s58
    %s60 = sadd.s32 0, 0
    %p61 = scmp.lt.s32.totalorder %s60, 0
    %s62 = scalar_select %p61, %s60, 0
    %s63 = smul.u32 2, %s62
    %p64 = scmp.eq.s32.totalorder 0, 0
    // Predicated region
    $region18: #{tpu_custom_call.1} parent=1 // pred_check
      %p65 = pneg %p64
    $region19: #{tpu_custom_call.1} parent=1 // pred_check_branch
      %67 = sbr.rel (%p65) target = $region21
    $region20: #{tpu_custom_call.1} parent=1 // pred_region
      %68 = vst [vmem:[#allocation2] sm:$0xff] 0.0
    $region21: #{tpu_custom_call.1} parent=1 // pred_fallthru
      _
    %v69 = vld [vmem:[#allocation3] sm:$0xff]
    %v70 = vld [vmem:[#allocation3 + $0x8] sm:$0xff]
    %v71 = vld [vmem:[#allocation6] sm:$0xff]
    %v72 = vld [vmem:[#allocation6 + $0x8] sm:$0xff]
    %vm73 = vcmp.gt.f32.partialorder %v71, 0.0
    %vm74 = vcmp.gt.f32.partialorder %v72, 0.0
    %v75 = vsel %vm73, 1, 0
    %v76 = vsel %vm74, 1, 0
    %v77 = vcvt.s32.f32 %v75
    %v78 = vcvt.s32.f32 %v76
    %v79 = vmax.f32 %v69, 0.0
    %v80 = vmax.f32 %v70, 0.0
    %v81 = vmul.f32 %v69, %v77
    %v82 = vmul.f32 %v70, %v78
    %v83 = vsub.f32 %v79, %v81
    %v84 = vsub.f32 %v80, %v82
    %v85 = vand.u32 2147483647, %v69
    %v86 = vand.u32 2147483647, %v70
    %v87 = vsub.f32 0.0, %v85
    %v88 = vsub.f32 0.0, %v86
    %v89 = vmul.f32 %v87, 1.442695
    %v90 = vpow.pop %v89
    %v91 = vmul.f32 %v88, 1.442695
    %v92 = vpow.pop %v91
    %v93 = vadd.f32 %v90, 1.0
    %v94 = vlog2.pop %v93
    %v95 = vmul.f32 %v94, 0.6931472
    %v96 = vmul.f32 -0.5, %v90
    %v97 = vadd.f32 %v96, 1.0
    %v98 = vmul.f32 %v97, %v90
    %v99 = vand.u32 2147483647, %v90
    %vm100 = vcmp.lt.f32.partialorder %v99, 0.0004427343
    %v101 = vsel %vm100, %v98, %v95
    %v102 = vadd.f32 %v92, 1.0
    %v103 = vlog2.pop %v102
    %v104 = vmul.f32 %v103, 0.6931472
    %v105 = vmul.f32 -0.5, %v92
    %v106 = vadd.f32 %v105, 1.0
    %v107 = vmul.f32 %v106, %v92
    %v108 = vand.u32 2147483647, %v92
    %vm109 = vcmp.lt.f32.partialorder %v108, 0.0004427343
    %v110 = vsel %vm109, %v107, %v104
    %v111 = vadd.f32 %v83, %v101
    %v112 = vadd.f32 %v84, %v110
    %v113 = vld [vmem:[#allocation2] sm:$0xff]
    %v114 = vadd.f32 %v111, %v112
    %v115 = vadd.f32 %v113, %v114
    %116 = vst [vmem:[#allocation2] sm:$0xff] %v115
    // Predicated region
    $region22: #{tpu_custom_call.1} parent=1 // pred_check
      %p117 = pneg %p64
    $region23: #{tpu_custom_call.1} parent=1 // pred_check_branch
      %119 = sbr.rel (%p117) target = $region25
    $region24: #{tpu_custom_call.1} parent=1 // pred_region
      %v120 = vld [vmem:[#allocation2] sm:$0xff]
      %121 = vadd.xlane.f32.xlu0 %v120
      %v122 = vpop.xlane.xlu0 %121
      %v123 = vrot.slane %v122, 4
      %v124 = vadd.f32 %v122, %v123
      %v125 = vrot.slane %v124, 2
      %v126 = vadd.f32 %v124, %v125
      %v127 = vrot.slane %v126, 1
      %v128 = vadd.f32 %v126, %v127
      %s129 = vtos %v128
      %s130 = scalar_lea.smem [#allocation8], 0
      %131 = sst [smem:[%s130]] %s129
    $region25: #{tpu_custom_call.1} parent=1 // pred_fallthru
      _
    // Predicated region
    $region26: #{tpu_custom_call.1} parent=1 // pred_check
      _
    $region27: #{tpu_custom_call.1} parent=1 // pred_check_branch
      %133 = sbr.rel (0) target = $region29
    $region28: #{tpu_custom_call.1} parent=1 // pred_region
      %135 = vsyncadd [#allocation5], 0
      %s137 = sshll.u32 %s2, 4
      %s138 = int_to_ptr.hbm [resolvable:$true] %s137
      %140 = dma.smem_to_hbm [#allocation8], 16, %s138, [#allocation5]
    $region29: #{tpu_custom_call.1} parent=1 // pred_fallthru
      _
    // Predicated region
    $region30: #{tpu_custom_call.1} parent=1 // pred_check
      _
    $region31: #{tpu_custom_call.1} parent=1 // pred_check_branch
      %142 = sbr.rel (0) target = $region33
    $region32: #{tpu_custom_call.1} parent=1 // pred_region
      %144 = dma.done [#allocation5], 16
    $region33: #{tpu_custom_call.1} parent=1 // pred_fallthru
      _
    %145 = sfence
    %146 = vsyncpa [#allocation4], 1
    %147 = vsyncpa [#allocation7], 1
    %148 = vsyncpa [#allocation5], 1

</llo_original>
